<compile_context>
chip_gen: v7x
topology: tpu7x:2x2x1
jax: 0.10.0
libtpu: 0.0.40
codegen_flags: <defaults>
</compile_context>

<pallas_src>
import functools

import jax
import jax.numpy as jnp
from jax.experimental import pallas as pl
from jax.experimental.pallas import tpu as pltpu


def _round_up(x, m):
    return (x + m - 1) // m * m


def _focal_loss_kernel(*refs, gamma, epsilon, alpha_mode, alpha_scalar):
    if alpha_mode == "vector":
        logits_ref, targets_ref, alpha_ref, out_ref = refs
    else:
        logits_ref, targets_ref, out_ref = refs
        alpha_ref = None

    logits = logits_ref[...].astype(jnp.float32)      # (tile_n, C) upcast in-kernel
    tgt = targets_ref[...]                            # (tile_n, 1) int32
    tile_n, num_classes = logits.shape
    tile_rows = out_ref.shape[0]                      # tile_n // 128

    class_ids = jax.lax.broadcasted_iota(jnp.int32, (tile_n, num_classes), 1)
    onehot = class_ids == tgt                         # (tile_n, C)

    # Numerically stable cross entropy, reduction='none'.
    row_max = jnp.max(logits, axis=-1, keepdims=True)
    shifted = logits - row_max
    lse = jnp.log(jnp.sum(jnp.exp(shifted), axis=-1, keepdims=True))
    tgt_shift = jnp.sum(jnp.where(onehot, shifted, 0.0), axis=-1, keepdims=True)
    ce = lse - tgt_shift                              # (tile_n, 1)

    # pt = exp(-ce).clamp(min=epsilon);  modulation = (1 - pt) ** gamma
    pt = jnp.maximum(jnp.exp(-ce), epsilon)
    one_minus_pt = jnp.maximum(1.0 - pt, 0.0)         # clamp guards pow/NaN when ce ~ 0

    g = float(gamma)
    if g.is_integer() and 0.0 <= g <= 8.0:
        gi = int(g)
        if gi == 0:
            w = jnp.ones_like(one_minus_pt)
        else:
            w = one_minus_pt
            for _ in range(gi - 1):                   # pure VPU multiplies
                w = w * one_minus_pt
    else:
        w = one_minus_pt ** g                         # EUP log/exp path (base clamped >= 0)

    focal = w * ce                                    # (tile_n, 1)

    if alpha_mode == "vector":
        alpha = alpha_ref[...].astype(jnp.float32)    # (1, C) -> broadcast in the where
        alpha_t = jnp.sum(jnp.where(onehot, alpha, 0.0), axis=-1, keepdims=True)
        focal = alpha_t * focal
    elif alpha_mode == "scalar":
        focal = focal * jnp.float32(alpha_scalar)

    # Lane-dense store: row i of this tile lands at slab[i // 128, i % 128].
    out_ref[...] = focal.reshape(tile_rows, 128)


def focal_loss(inputs, targets, *, alpha=None, gamma=2.0, reduction="mean",
               epsilon=1e-6, tile_n=None):
    """Pallas TPU implementation of FocalLoss.forward for 2-D (N, C) logits."""
    n, c = inputs.shape
    itemsize = jnp.dtype(inputs.dtype).itemsize
    n128 = _round_up(n, 128)

    # ---- tile sizing: ~512 KiB of logits per pipeline buffer (fits every gen) ----
    if tile_n is None:
        tile_n = (512 * 1024) // max(1, c * itemsize)
    tile_n = max(128, (int(tile_n) // 128) * 128)

    if n128 <= tile_n:
        tile_n = n128                     # single tile: block shape == full array shape
    else:
        # Multi-tile: keep the output block's sublane dim (tile_n // 128) a multiple
        # of 8 so the lane-dense (tile_rows, 128) block obeys the (8, 128) rule.
        tile_n = max(1024, _round_up(tile_n, 1024))
        if tile_n >= n128:
            tile_n = n128
    n_pad = _round_up(max(n, 1), tile_n)
    tile_rows = tile_n // 128
    grid = (n_pad // tile_n,)

    # ---- static alpha specialization ---------------------------------------------
    if alpha is None:
        alpha_mode, alpha_scalar, alpha_vec = "none", 1.0, None
    elif isinstance(alpha, (float, int)):
        alpha_mode, alpha_scalar, alpha_vec = "scalar", float(alpha), None
    else:
        alpha_mode, alpha_scalar = "vector", 1.0
        alpha_vec = jnp.asarray(alpha, jnp.float32).reshape(1, c)

    # ---- pad rows so the grid divides evenly (padded rows sliced off afterwards) --
    logits_p = inputs                                   # native dtype, no wrapper upcast
    targets_p = targets.astype(jnp.int32)
    if n_pad != n:
        logits_p = jnp.pad(logits_p, ((0, n_pad - n), (0, 0)))
        targets_p = jnp.pad(targets_p, (0, n_pad - n))
    targets_p = targets_p.reshape(n_pad, 1)

    kernel = functools.partial(
        _focal_loss_kernel,
        gamma=float(gamma), epsilon=float(epsilon),
        alpha_mode=alpha_mode, alpha_scalar=alpha_scalar)

    in_specs = [
        pl.BlockSpec((tile_n, c), lambda i: (i, 0)),    # logits tile
        pl.BlockSpec((tile_n, 1), lambda i: (i, 0)),    # targets tile
    ]
    args = [logits_p, targets_p]
    if alpha_mode == "vector":
        in_specs.append(pl.BlockSpec((1, c), lambda i: (0, 0)))
        args.append(alpha_vec)

    # Rough VMEM budget: double-buffered logits/targets/output + slack for
    # intermediates; stays comfortably inside the v7x 64 MiB budget.
    vmem_bytes = 2 * (tile_n * c * itemsize + tile_n * 4 + tile_rows * 128 * 4)
    vmem_bytes += 8 * tile_n * 4 + (1 << 20)
    vmem_limit = int(min(48 * 1024 * 1024, max(vmem_bytes, 8 * 1024 * 1024)))

    per_row_slab = pl.pallas_call(
        kernel,
        out_shape=jax.ShapeDtypeStruct((n_pad // 128, 128), jnp.float32),
        grid_spec=pltpu.PrefetchScalarGridSpec(
            num_scalar_prefetch=0,
            grid=grid,
            in_specs=in_specs,
            out_specs=pl.BlockSpec((tile_rows, 128), lambda i: (i, 0)),
        ),
        compiler_params=pltpu.CompilerParams(
            dimension_semantics=("parallel",),
            vmem_limit_bytes=vmem_limit),
    )(*args)

    # Row i lives at slab[i // 128, i % 128]; flatten and drop padded rows.
    per_row = per_row_slab.reshape(-1)[:n]

    if reduction == "mean":
        return jnp.mean(per_row)
    elif reduction == "sum":
        return jnp.sum(per_row)
    return per_row


def _reference_focal_loss(inputs, targets, alpha=None, gamma=2.0,
                          reduction="mean", epsilon=1e-6):
    logprob = jax.nn.log_softmax(inputs.astype(jnp.float32), axis=-1)
    ce = -jnp.take_along_axis(logprob, targets[:, None].astype(jnp.int32),
                              axis=-1)[:, 0]
    pt = jnp.maximum(jnp.exp(-ce), epsilon)
    focal = (1.0 - pt) ** gamma * ce
    if alpha is not None:
        if isinstance(alpha, (float, int)):
            focal = focal * float(alpha)
        else:
            focal = jnp.asarray(alpha, jnp.float32)[targets] * focal
    if reduction == "mean":
        return focal.mean()
    elif reduction == "sum":
        return focal.sum()
    return focal


if __name__ == "__main__":
    key = jax.random.PRNGKey(0)
    k1, k2, k3, k4 = jax.random.split(key, 4)

    # Case 1: default FocalLoss config (alpha=None, gamma=2, 'mean'), f32, single tile.
    N1, C1 = 256, 16
    logits1 = jax.random.normal(k1, (N1, C1), dtype=jnp.float32)
    targets1 = jax.random.randint(k2, (N1,), 0, C1, dtype=jnp.int32)
    out1 = jax.block_until_ready(focal_loss(logits1, targets1))
    ref1 = _reference_focal_loss(logits1, targets1)
    assert jnp.allclose(out1, ref1, rtol=1e-5, atol=1e-6), (out1, ref1)

    # Case 2: per-class alpha, 'none' reduction, N not a multiple of 128 (padding path).
    N2, C2 = 200, 7
    logits2 = jax.random.normal(k3, (N2, C2), dtype=jnp.float32)
    targets2 = jax.random.randint(k4, (N2,), 0, C2, dtype=jnp.int32)
    alpha2 = [0.25 + 0.1 * i for i in range(C2)]
    out2 = jax.block_until_ready(
        focal_loss(logits2, targets2, alpha=alpha2, gamma=2.0, reduction="none"))
    ref2 = _reference_focal_loss(logits2, targets2, alpha=alpha2, gamma=2.0,
                                 reduction="none")
    assert out2.shape == (N2,)
    assert jnp.allclose(out2, ref2, rtol=1e-5, atol=1e-6)

    # Case 3: bf16 logits (native-dtype streaming), scalar alpha, 'sum',
    #         multi-tile grid with row padding (N=2304 -> 3 tiles of 1024).
    N3, C3 = 2304, 16
    logits3 = jax.random.normal(k1, (N3, C3), dtype=jnp.float32).astype(jnp.bfloat16)
    targets3 = jax.random.randint(k2, (N3,), 0, C3, dtype=jnp.int32)
    out3 = jax.block_until_ready(
        focal_loss(logits3, targets3, alpha=0.25, gamma=2.0, reduction="sum",
                   tile_n=1024))
    ref3 = _reference_focal_loss(logits3, targets3, alpha=0.25, gamma=2.0,
                                 reduction="sum")
    assert jnp.allclose(out3, ref3, rtol=1e-4, atol=1e-3), (out3, ref3)

    print("KERNEL_OK")
</pallas_src>

<mosaic_0001>
module attributes {stable_mosaic.version = 11 : i64} {
  func.func @_focal_loss_kernel(%arg0: i32, %arg1: memref<256x16xf32, #tpu.memory_space<vmem>>, %arg2: memref<256x1xi32, #tpu.memory_space<vmem>>, %arg3: memref<2x128xf32, #tpu.memory_space<vmem>>) attributes {dimension_semantics = [#tpu.dimension_semantics<parallel>], iteration_bounds = array<i64: 1>, scalar_prefetch = 0 : i64, scratch_operands = 0 : i64, tpu.core_type = #tpu.core_type<tc>, window_params = [{transform_indices = @transform_0, window_bounds = array<i64: 256, 16>}, {transform_indices = @transform_1, window_bounds = array<i64: 256, 1>}, {transform_indices = @transform_2, window_bounds = array<i64: 2, 128>}]} {
    %c0 = arith.constant 0 : index
    %c0_0 = arith.constant 0 : index
    %0 = vector.load %arg1[%c0, %c0_0] : memref<256x16xf32, #tpu.memory_space<vmem>>, vector<256x16xf32>
    %c0_1 = arith.constant 0 : index
    %c0_2 = arith.constant 0 : index
    %1 = vector.load %arg2[%c0_1, %c0_2] : memref<256x1xi32, #tpu.memory_space<vmem>>, vector<256x1xi32>
    %2 = tpu.iota {dimensions = array<i32: 1>} : vector<256x16xi32>
    %3 = vector.broadcast %1 : vector<256x1xi32> to vector<256x16xi32>
    %4 = arith.cmpi eq, %2, %3 : vector<256x16xi32>
    %cst = arith.constant dense<0xFF800000> : vector<256xf32>
    %5 = vector.multi_reduction <maximumf>, %0, %cst [1] : vector<256x16xf32> to vector<256xf32>
    %6 = vector.shape_cast %5 : vector<256xf32> to vector<256x1xf32>
    %7 = vector.broadcast %6 : vector<256x1xf32> to vector<256x16xf32>
    %8 = arith.subf %0, %7 : vector<256x16xf32>
    %9 = math.exp %8 : vector<256x16xf32>
    %cst_3 = arith.constant dense<0.000000e+00> : vector<256xf32>
    %10 = vector.multi_reduction <add>, %9, %cst_3 [1] : vector<256x16xf32> to vector<256xf32>
    %11 = vector.shape_cast %10 : vector<256xf32> to vector<256x1xf32>
    %12 = math.log %11 : vector<256x1xf32>
    %cst_4 = arith.constant 0.000000e+00 : f32
    %13 = vector.broadcast %cst_4 : f32 to vector<256x16xf32>
    %14 = arith.select %4, %8, %13 : vector<256x16xi1>, vector<256x16xf32>
    %cst_5 = arith.constant dense<0.000000e+00> : vector<256xf32>
    %15 = vector.multi_reduction <add>, %14, %cst_5 [1] : vector<256x16xf32> to vector<256xf32>
    %16 = vector.shape_cast %15 : vector<256xf32> to vector<256x1xf32>
    %17 = arith.subf %12, %16 : vector<256x1xf32>
    %cst_6 = arith.constant 0.000000e+00 : f32
    %18 = vector.broadcast %cst_6 : f32 to vector<256x1xf32>
    %19 = arith.subf %18, %17 : vector<256x1xf32>
    %20 = math.exp %19 : vector<256x1xf32>
    %cst_7 = arith.constant 9.99999997E-7 : f32
    %21 = vector.broadcast %cst_7 : f32 to vector<256x1xf32>
    %22 = arith.maximumf %20, %21 : vector<256x1xf32>
    %cst_8 = arith.constant 1.000000e+00 : f32
    %23 = vector.broadcast %cst_8 : f32 to vector<256x1xf32>
    %24 = arith.subf %23, %22 : vector<256x1xf32>
    %cst_9 = arith.constant 0.000000e+00 : f32
    %25 = vector.broadcast %cst_9 : f32 to vector<256x1xf32>
    %26 = arith.maximumf %24, %25 : vector<256x1xf32>
    %27 = arith.mulf %26, %26 : vector<256x1xf32>
    %28 = arith.mulf %27, %17 : vector<256x1xf32>
    %29 = vector.shape_cast %28 : vector<256x1xf32> to vector<2x128xf32>
    %c0_10 = arith.constant 0 : index
    %c0_11 = arith.constant 0 : index
    %30 = vector.load %arg3[%c0_10, %c0_11] : memref<2x128xf32, #tpu.memory_space<vmem>>, vector<2x128xf32>
    tpu.vector_store %arg3[%c0_10, %c0_11], %29 {strides = array<i32>} : memref<2x128xf32, #tpu.memory_space<vmem>>, vector<2x128xf32>,
    return
  }
  func.func @transform_0(%arg0: i32) -> (i32, i32) {
    %c0_i32 = arith.constant 0 : i32
    %c0_i32_0 = arith.constant 0 : i32
    return %arg0, %c0_i32 : i32, i32
  }
  func.func @transform_1(%arg0: i32) -> (i32, i32) {
    %c0_i32 = arith.constant 0 : i32
    %c0_i32_0 = arith.constant 0 : i32
    return %arg0, %c0_i32 : i32, i32
  }
  func.func @transform_2(%arg0: i32) -> (i32, i32) {
    %c0_i32 = arith.constant 0 : i32
    %c0_i32_0 = arith.constant 0 : i32
    return %arg0, %c0_i32 : i32, i32
  }
}

</mosaic_0001>

<llo_original>
// kernel: tpu_custom_call.1
$region0: #{tpu_custom_call.1}
  #allocation0 [shape = 'u32[]', space=smem, size = 0x4, offset = 0x4, fixed_abs, tag = 'smem constant byte address 0x4 - core index']
  #allocation1 [shape = 'u32[144,128]{1,0:T(1,128)}', space=vmem, size = 0x12000, scoped, tag = 'internal scratch']
  %s0 = inlined_call_operand.vmem [shape: f32[256,16], index: 0, kind: input, shape index: {}]
  %s1 = inlined_call_operand.vmem [shape: s32[256,1], index: 1, kind: input, shape index: {}]
  %s2 = inlined_call_operand.hbm [shape: f32[2,128], index: 2, kind: output, shape index: {}]
  %s3 = sld [smem:[#allocation0]]
  $region18: #{tpu_custom_call.1} parent=0
    _
  %s5 = ssub.s32 1, %s3
  %s6 = scalar_select 0, %s5, %s3
  $region1: #{tpu_custom_call.1} parent=0
    #allocation2 [shape = 'u8[1024]{0}', space=vmem, size = 0x400, scoped, tag = 'output window, operand 0, single buffered']
    #allocation3 [shape = 's32[1]{0}', space=sflag, size = 0x4, scoped, tag = 'scoped memory for tpu_custom_call.1']
    %7 = vsyncpa [#allocation3], 0
    // Predicated region
    $region2: #{tpu_custom_call.1} parent=1 // pred_check
      _
    $region3: #{tpu_custom_call.1} parent=1 // pred_check_branch
      %9 = sbr.rel (0) target = $region5
    $region4: #{tpu_custom_call.1} parent=1 // pred_region
      _
    $region5: #{tpu_custom_call.1} parent=1 // pred_fallthru
      _
    // Predicated region
    $region6: #{tpu_custom_call.1} parent=1 // pred_check
      _
    $region7: #{tpu_custom_call.1} parent=1 // pred_check_branch
      %11 = sbr.rel (0) target = $region9
    $region8: #{tpu_custom_call.1} parent=1 // pred_region
      _
    $region9: #{tpu_custom_call.1} parent=1 // pred_fallthru
      _
    %v12 = vld [vmem:[%s0] sm:$0xff]
    %v13 = vld [vmem:[%s0 + $0x8] sm:$0xff]
    %v14 = vld [vmem:[%s0 + $0x10] sm:$0xff]
    %v15 = vld [vmem:[%s0 + $0x18] sm:$0xff]
    %v16 = vld [vmem:[%s0 + $0x20] sm:$0xff]
    %v17 = vld [vmem:[%s0 + $0x28] sm:$0xff]
    %v18 = vld [vmem:[%s0 + $0x30] sm:$0xff]
    %v19 = vld [vmem:[%s0 + $0x38] sm:$0xff]
    %v20 = vld [vmem:[%s0 + $0x40] sm:$0xff]
    %v21 = vld [vmem:[%s0 + $0x48] sm:$0xff]
    %v22 = vld [vmem:[%s0 + $0x50] sm:$0xff]
    %v23 = vld [vmem:[%s0 + $0x58] sm:$0xff]
    %v24 = vld [vmem:[%s0 + $0x60] sm:$0xff]
    %v25 = vld [vmem:[%s0 + $0x68] sm:$0xff]
    %v26 = vld [vmem:[%s0 + $0x70] sm:$0xff]
    %v27 = vld [vmem:[%s0 + $0x78] sm:$0xff]
    %v28 = vld [vmem:[%s0 + $0x80] sm:$0xff]
    %v29 = vld [vmem:[%s0 + $0x88] sm:$0xff]
    %v30 = vld [vmem:[%s0 + $0x90] sm:$0xff]
    %v31 = vld [vmem:[%s0 + $0x98] sm:$0xff]
    %v32 = vld [vmem:[%s0 + $0xa0] sm:$0xff]
    %v33 = vld [vmem:[%s0 + $0xa8] sm:$0xff]
    %v34 = vld [vmem:[%s0 + $0xb0] sm:$0xff]
    %v35 = vld [vmem:[%s0 + $0xb8] sm:$0xff]
    %v36 = vld [vmem:[%s0 + $0xc0] sm:$0xff]
    %v37 = vld [vmem:[%s0 + $0xc8] sm:$0xff]
    %v38 = vld [vmem:[%s0 + $0xd0] sm:$0xff]
    %v39 = vld [vmem:[%s0 + $0xd8] sm:$0xff]
    %v40 = vld [vmem:[%s0 + $0xe0] sm:$0xff]
    %v41 = vld [vmem:[%s0 + $0xe8] sm:$0xff]
    %v42 = vld [vmem:[%s0 + $0xf0] sm:$0xff]
    %v43 = vld [vmem:[%s0 + $0xf8] sm:$0xff]
    %v44 = vld [vmem:[%s1] sm:$0xff]
    %v45 = vld [vmem:[%s1 + $0x8] sm:$0xff]
    %v46 = vld [vmem:[%s1 + $0x10] sm:$0xff]
    %v47 = vld [vmem:[%s1 + $0x18] sm:$0xff]
    %v48 = vld [vmem:[%s1 + $0x20] sm:$0xff]
    %v49 = vld [vmem:[%s1 + $0x28] sm:$0xff]
    %v50 = vld [vmem:[%s1 + $0x30] sm:$0xff]
    %v51 = vld [vmem:[%s1 + $0x38] sm:$0xff]
    %v52 = vld [vmem:[%s1 + $0x40] sm:$0xff]
    %v53 = vld [vmem:[%s1 + $0x48] sm:$0xff]
    %v54 = vld [vmem:[%s1 + $0x50] sm:$0xff]
    %v55 = vld [vmem:[%s1 + $0x58] sm:$0xff]
    %v56 = vld [vmem:[%s1 + $0x60] sm:$0xff]
    %v57 = vld [vmem:[%s1 + $0x68] sm:$0xff]
    %v58 = vld [vmem:[%s1 + $0x70] sm:$0xff]
    %v59 = vld [vmem:[%s1 + $0x78] sm:$0xff]
    %v60 = vld [vmem:[%s1 + $0x80] sm:$0xff]
    %v61 = vld [vmem:[%s1 + $0x88] sm:$0xff]
    %v62 = vld [vmem:[%s1 + $0x90] sm:$0xff]
    %v63 = vld [vmem:[%s1 + $0x98] sm:$0xff]
    %v64 = vld [vmem:[%s1 + $0xa0] sm:$0xff]
    %v65 = vld [vmem:[%s1 + $0xa8] sm:$0xff]
    %v66 = vld [vmem:[%s1 + $0xb0] sm:$0xff]
    %v67 = vld [vmem:[%s1 + $0xb8] sm:$0xff]
    %v68 = vld [vmem:[%s1 + $0xc0] sm:$0xff]
    %v69 = vld [vmem:[%s1 + $0xc8] sm:$0xff]
    %v70 = vld [vmem:[%s1 + $0xd0] sm:$0xff]
    %v71 = vld [vmem:[%s1 + $0xd8] sm:$0xff]
    %v72 = vld [vmem:[%s1 + $0xe0] sm:$0xff]
    %v73 = vld [vmem:[%s1 + $0xe8] sm:$0xff]
    %v74 = vld [vmem:[%s1 + $0xf0] sm:$0xff]
    %v75 = vld [vmem:[%s1 + $0xf8] sm:$0xff]
    %v76 = vlaneseq
    %v77 = vand.u32 %v76, 127
    %78 = vset.pattern.permute.xlu0 0
    %79 = vperm.xlu0 %78, %v44
    %v80 = vpop.permute.xlu0 %79
    %81 = vset.pattern.permute.xlu0 0
    %82 = vperm.xlu0 %81, %v45
    %v83 = vpop.permute.xlu0 %82
    %84 = vset.pattern.permute.xlu0 0
    %85 = vperm.xlu0 %84, %v46
    %v86 = vpop.permute.xlu0 %85
    %87 = vset.pattern.permute.xlu0 0
    %88 = vperm.xlu0 %87, %v47
    %v89 = vpop.permute.xlu0 %88
    %90 = vset.pattern.permute.xlu0 0
    %91 = vperm.xlu0 %90, %v48
    %v92 = vpop.permute.xlu0 %91
    %93 = vset.pattern.permute.xlu0 0
    %94 = vperm.xlu0 %93, %v49
    %v95 = vpop.permute.xlu0 %94
    %96 = vset.pattern.permute.xlu0 0
    %97 = vperm.xlu0 %96, %v50
    %v98 = vpop.permute.xlu0 %97
    %99 = vset.pattern.permute.xlu0 0
    %100 = vperm.xlu0 %99, %v51
    %v101 = vpop.permute.xlu0 %100
    %102 = vset.pattern.permute.xlu0 0
    %103 = vperm.xlu0 %102, %v52
    %v104 = vpop.permute.xlu0 %103
    %105 = vset.pattern.permute.xlu0 0
    %106 = vperm.xlu0 %105, %v53
    %v107 = vpop.permute.xlu0 %106
    %108 = vset.pattern.permute.xlu0 0
    %109 = vperm.xlu0 %108, %v54
    %v110 = vpop.permute.xlu0 %109
    %111 = vset.pattern.permute.xlu0 0
    %112 = vperm.xlu0 %111, %v55
    %v113 = vpop.permute.xlu0 %112
    %114 = vset.pattern.permute.xlu0 0
    %115 = vperm.xlu0 %114, %v56
    %v116 = vpop.permute.xlu0 %115
    %117 = vset.pattern.permute.xlu0 0
    %118 = vperm.xlu0 %117, %v57
    %v119 = vpop.permute.xlu0 %118
    %120 = vset.pattern.permute.xlu0 0
    %121 = vperm.xlu0 %120, %v58
    %v122 = vpop.permute.xlu0 %121
    %123 = vset.pattern.permute.xlu0 0
    %124 = vperm.xlu0 %123, %v59
    %v125 = vpop.permute.xlu0 %124
    %126 = vset.pattern.permute.xlu0 0
    %127 = vperm.xlu0 %126, %v60
    %v128 = vpop.permute.xlu0 %127
    %129 = vset.pattern.permute.xlu0 0
    %130 = vperm.xlu0 %129, %v61
    %v131 = vpop.permute.xlu0 %130
    %132 = vset.pattern.permute.xlu0 0
    %133 = vperm.xlu0 %132, %v62
    %v134 = vpop.permute.xlu0 %133
    %135 = vset.pattern.permute.xlu0 0
    %136 = vperm.xlu0 %135, %v63
    %v137 = vpop.permute.xlu0 %136
    %138 = vset.pattern.permute.xlu0 0
    %139 = vperm.xlu0 %138, %v64
    %v140 = vpop.permute.xlu0 %139
    %141 = vset.pattern.permute.xlu0 0
    %142 = vperm.xlu0 %141, %v65
    %v143 = vpop.permute.xlu0 %142
    %144 = vset.pattern.permute.xlu0 0
    %145 = vperm.xlu0 %144, %v66
    %v146 = vpop.permute.xlu0 %145
    %147 = vset.pattern.permute.xlu0 0
    %148 = vperm.xlu0 %147, %v67
    %v149 = vpop.permute.xlu0 %148
    %150 = vset.pattern.permute.xlu0 0
    %151 = vperm.xlu0 %150, %v68
    %v152 = vpop.permute.xlu0 %151
    %153 = vset.pattern.permute.xlu0 0
    %154 = vperm.xlu0 %153, %v69
    %v155 = vpop.permute.xlu0 %154
    %156 = vset.pattern.permute.xlu0 0
    %157 = vperm.xlu0 %156, %v70
    %v158 = vpop.permute.xlu0 %157
    %159 = vset.pattern.permute.xlu0 0
    %160 = vperm.xlu0 %159, %v71
    %v161 = vpop.permute.xlu0 %160
    %162 = vset.pattern.permute.xlu0 0
    %163 = vperm.xlu0 %162, %v72
    %v164 = vpop.permute.xlu0 %163
    %165 = vset.pattern.permute.xlu0 0
    %166 = vperm.xlu0 %165, %v73
    %v167 = vpop.permute.xlu0 %166
    %168 = vset.pattern.permute.xlu0 0
    %169 = vperm.xlu0 %168, %v74
    %v170 = vpop.permute.xlu0 %169
    %171 = vset.pattern.permute.xlu0 0
    %172 = vperm.xlu0 %171, %v75
    %v173 = vpop.permute.xlu0 %172
    %vm174 = vcmp.eq.s32.totalorder %v77, %v80
    %vm175 = vcmp.eq.s32.totalorder %v77, %v83
    %vm176 = vcmp.eq.s32.totalorder %v77, %v86
    %vm177 = vcmp.eq.s32.totalorder %v77, %v89
    %vm178 = vcmp.eq.s32.totalorder %v77, %v92
    %vm179 = vcmp.eq.s32.totalorder %v77, %v95
    %vm180 = vcmp.eq.s32.totalorder %v77, %v98
    %vm181 = vcmp.eq.s32.totalorder %v77, %v101
    %vm182 = vcmp.eq.s32.totalorder %v77, %v104
    %vm183 = vcmp.eq.s32.totalorder %v77, %v107
    %vm184 = vcmp.eq.s32.totalorder %v77, %v110
    %vm185 = vcmp.eq.s32.totalorder %v77, %v113
    %vm186 = vcmp.eq.s32.totalorder %v77, %v116
    %vm187 = vcmp.eq.s32.totalorder %v77, %v119
    %vm188 = vcmp.eq.s32.totalorder %v77, %v122
    %vm189 = vcmp.eq.s32.totalorder %v77, %v125
    %vm190 = vcmp.eq.s32.totalorder %v77, %v128
    %vm191 = vcmp.eq.s32.totalorder %v77, %v131
    %vm192 = vcmp.eq.s32.totalorder %v77, %v134
    %vm193 = vcmp.eq.s32.totalorder %v77, %v137
    %vm194 = vcmp.eq.s32.totalorder %v77, %v140
    %vm195 = vcmp.eq.s32.totalorder %v77, %v143
    %vm196 = vcmp.eq.s32.totalorder %v77, %v146
    %vm197 = vcmp.eq.s32.totalorder %v77, %v149
    %vm198 = vcmp.eq.s32.totalorder %v77, %v152
    %vm199 = vcmp.eq.s32.totalorder %v77, %v155
    %vm200 = vcmp.eq.s32.totalorder %v77, %v158
    %vm201 = vcmp.eq.s32.totalorder %v77, %v161
    %vm202 = vcmp.eq.s32.totalorder %v77, %v164
    %vm203 = vcmp.eq.s32.totalorder %v77, %v167
    %vm204 = vcmp.eq.s32.totalorder %v77, %v170
    %vm205 = vcmp.eq.s32.totalorder %v77, %v173
    %vm206 = vcmask 130048
    %v207 = vsel %vm206, %v12, -inf
    %208 = vmax.xlane.f32.xlu0 %v207
    %v209 = vpop.xlane.xlu0 %208
    %v210 = vsel %vm206, %v13, -inf
    %211 = vmax.xlane.f32.xlu0 %v210
    %v212 = vpop.xlane.xlu0 %211
    %v213 = vsel %vm206, %v14, -inf
    %214 = vmax.xlane.f32.xlu0 %v213
    %v215 = vpop.xlane.xlu0 %214
    %v216 = vsel %vm206, %v15, -inf
    %217 = vmax.xlane.f32.xlu0 %v216
    %v218 = vpop.xlane.xlu0 %217
    %v219 = vsel %vm206, %v16, -inf
    %220 = vmax.xlane.f32.xlu0 %v219
    %v221 = vpop.xlane.xlu0 %220
    %v222 = vsel %vm206, %v17, -inf
    %223 = vmax.xlane.f32.xlu0 %v222
    %v224 = vpop.xlane.xlu0 %223
    %v225 = vsel %vm206, %v18, -inf
    %226 = vmax.xlane.f32.xlu0 %v225
    %v227 = vpop.xlane.xlu0 %226
    %v228 = vsel %vm206, %v19, -inf
    %229 = vmax.xlane.f32.xlu0 %v228
    %v230 = vpop.xlane.xlu0 %229
    %v231 = vsel %vm206, %v20, -inf
    %232 = vmax.xlane.f32.xlu0 %v231
    %v233 = vpop.xlane.xlu0 %232
    %v234 = vsel %vm206, %v21, -inf
    %235 = vmax.xlane.f32.xlu0 %v234
    %v236 = vpop.xlane.xlu0 %235
    %v237 = vsel %vm206, %v22, -inf
    %238 = vmax.xlane.f32.xlu0 %v237
    %v239 = vpop.xlane.xlu0 %238
    %v240 = vsel %vm206, %v23, -inf
    %241 = vmax.xlane.f32.xlu0 %v240
    %v242 = vpop.xlane.xlu0 %241
    %v243 = vsel %vm206, %v24, -inf
    %244 = vmax.xlane.f32.xlu0 %v243
    %v245 = vpop.xlane.xlu0 %244
    %v246 = vsel %vm206, %v25, -inf
    %247 = vmax.xlane.f32.xlu0 %v246
    %v248 = vpop.xlane.xlu0 %247
    %v249 = vsel %vm206, %v26, -inf
    %250 = vmax.xlane.f32.xlu0 %v249
    %v251 = vpop.xlane.xlu0 %250
    %v252 = vsel %vm206, %v27, -inf
    %253 = vmax.xlane.f32.xlu0 %v252
    %v254 = vpop.xlane.xlu0 %253
    %v255 = vsel %vm206, %v28, -inf
    %256 = vmax.xlane.f32.xlu0 %v255
    %v257 = vpop.xlane.xlu0 %256
    %v258 = vsel %vm206, %v29, -inf
    %259 = vmax.xlane.f32.xlu0 %v258
    %v260 = vpop.xlane.xlu0 %259
    %v261 = vsel %vm206, %v30, -inf
    %262 = vmax.xlane.f32.xlu0 %v261
    %v263 = vpop.xlane.xlu0 %262
    %v264 = vsel %vm206, %v31, -inf
    %265 = vmax.xlane.f32.xlu0 %v264
    %v266 = vpop.xlane.xlu0 %265
    %v267 = vsel %vm206, %v32, -inf
    %268 = vmax.xlane.f32.xlu0 %v267
    %v269 = vpop.xlane.xlu0 %268
    %v270 = vsel %vm206, %v33, -inf
    %271 = vmax.xlane.f32.xlu0 %v270
    %v272 = vpop.xlane.xlu0 %271
    %v273 = vsel %vm206, %v34, -inf
    %274 = vmax.xlane.f32.xlu0 %v273
    %v275 = vpop.xlane.xlu0 %274
    %v276 = vsel %vm206, %v35, -inf
    %277 = vmax.xlane.f32.xlu0 %v276
    %v278 = vpop.xlane.xlu0 %277
    %v279 = vsel %vm206, %v36, -inf
    %280 = vmax.xlane.f32.xlu0 %v279
    %v281 = vpop.xlane.xlu0 %280
    %v282 = vsel %vm206, %v37, -inf
    %283 = vmax.xlane.f32.xlu0 %v282
    %v284 = vpop.xlane.xlu0 %283
    %v285 = vsel %vm206, %v38, -inf
    %286 = vmax.xlane.f32.xlu0 %v285
    %v287 = vpop.xlane.xlu0 %286
    %v288 = vsel %vm206, %v39, -inf
    %289 = vmax.xlane.f32.xlu0 %v288
    %v290 = vpop.xlane.xlu0 %289
    %v291 = vsel %vm206, %v40, -inf
    %292 = vmax.xlane.f32.xlu0 %v291
    %v293 = vpop.xlane.xlu0 %292
    %v294 = vsel %vm206, %v41, -inf
    %295 = vmax.xlane.f32.xlu0 %v294
    %v296 = vpop.xlane.xlu0 %295
    %v297 = vsel %vm206, %v42, -inf
    %298 = vmax.xlane.f32.xlu0 %v297
    %v299 = vpop.xlane.xlu0 %298
    %v300 = vsel %vm206, %v43, -inf
    %301 = vmax.xlane.f32.xlu0 %v300
    %v302 = vpop.xlane.xlu0 %301
    %v303 = vsub.f32 %v12, %v209
    %v304 = vsub.f32 %v13, %v212
    %v305 = vsub.f32 %v14, %v215
    %v306 = vsub.f32 %v15, %v218
    %v307 = vsub.f32 %v16, %v221
    %v308 = vsub.f32 %v17, %v224
    %v309 = vsub.f32 %v18, %v227
    %v310 = vsub.f32 %v19, %v230
    %v311 = vsub.f32 %v20, %v233
    %v312 = vsub.f32 %v21, %v236
    %v313 = vsub.f32 %v22, %v239
    %v314 = vsub.f32 %v23, %v242
    %v315 = vsub.f32 %v24, %v245
    %v316 = vsub.f32 %v25, %v248
    %v317 = vsub.f32 %v26, %v251
    %v318 = vsub.f32 %v27, %v254
    %v319 = vsub.f32 %v28, %v257
    %v320 = vsub.f32 %v29, %v260
    %v321 = vsub.f32 %v30, %v263
    %v322 = vsub.f32 %v31, %v266
    %v323 = vsub.f32 %v32, %v269
    %v324 = vsub.f32 %v33, %v272
    %v325 = vsub.f32 %v34, %v275
    %v326 = vsub.f32 %v35, %v278
    %v327 = vsub.f32 %v36, %v281
    %v328 = vsub.f32 %v37, %v284
    %v329 = vsub.f32 %v38, %v287
    %v330 = vsub.f32 %v39, %v290
    %v331 = vsub.f32 %v40, %v293
    %v332 = vsub.f32 %v41, %v296
    %v333 = vsub.f32 %v42, %v299
    %v334 = vsub.f32 %v43, %v302
    %v335 = vmul.f32 %v303, 1.442695
    %v336 = vpow.pop %v335
    %v337 = vmul.f32 %v304, 1.442695
    %v338 = vpow.pop %v337
    %v339 = vmul.f32 %v305, 1.442695
    %v340 = vpow.pop %v339
    %v341 = vmul.f32 %v306, 1.442695
    %v342 = vpow.pop %v341
    %v343 = vmul.f32 %v307, 1.442695
    %v344 = vpow.pop %v343
    %v345 = vmul.f32 %v308, 1.442695
    %v346 = vpow.pop %v345
    %v347 = vmul.f32 %v309, 1.442695
    %v348 = vpow.pop %v347
    %v349 = vmul.f32 %v310, 1.442695
    %v350 = vpow.pop %v349
    %v351 = vmul.f32 %v311, 1.442695
    %v352 = vpow.pop %v351
    %v353 = vmul.f32 %v312, 1.442695
    %v354 = vpow.pop %v353
    %v355 = vmul.f32 %v313, 1.442695
    %v356 = vpow.pop %v355
    %v357 = vmul.f32 %v314, 1.442695
    %v358 = vpow.pop %v357
    %v359 = vmul.f32 %v315, 1.442695
    %v360 = vpow.pop %v359
    %v361 = vmul.f32 %v316, 1.442695
    %v362 = vpow.pop %v361
    %v363 = vmul.f32 %v317, 1.442695
    %v364 = vpow.pop %v363
    %v365 = vmul.f32 %v318, 1.442695
    %v366 = vpow.pop %v365
    %v367 = vmul.f32 %v319, 1.442695
    %v368 = vpow.pop %v367
    %v369 = vmul.f32 %v320, 1.442695
    %v370 = vpow.pop %v369
    %v371 = vmul.f32 %v321, 1.442695
    %v372 = vpow.pop %v371
    %v373 = vmul.f32 %v322, 1.442695
    %v374 = vpow.pop %v373
    %v375 = vmul.f32 %v323, 1.442695
    %v376 = vpow.pop %v375
    %v377 = vmul.f32 %v324, 1.442695
    %v378 = vpow.pop %v377
    %v379 = vmul.f32 %v325, 1.442695
    %v380 = vpow.pop %v379
    %v381 = vmul.f32 %v326, 1.442695
    %v382 = vpow.pop %v381
    %v383 = vmul.f32 %v327, 1.442695
    %v384 = vpow.pop %v383
    %v385 = vmul.f32 %v328, 1.442695
    %v386 = vpow.pop %v385
    %v387 = vmul.f32 %v329, 1.442695
    %v388 = vpow.pop %v387
    %v389 = vmul.f32 %v330, 1.442695
    %v390 = vpow.pop %v389
    %v391 = vmul.f32 %v331, 1.442695
    %v392 = vpow.pop %v391
    %v393 = vmul.f32 %v332, 1.442695
    %v394 = vpow.pop %v393
    %v395 = vmul.f32 %v333, 1.442695
    %v396 = vpow.pop %v395
    %v397 = vmul.f32 %v334, 1.442695
    %v398 = vpow.pop %v397
    %v399 = vsel %vm206, %v336, 0.0
    %400 = vadd.xlane.f32.xlu0 %v399
    %v401 = vpop.xlane.xlu0 %400
    %v402 = vsel %vm206, %v338, 0.0
    %403 = vadd.xlane.f32.xlu0 %v402
    %v404 = vpop.xlane.xlu0 %403
    %v405 = vsel %vm206, %v340, 0.0
    %406 = vadd.xlane.f32.xlu0 %v405
    %v407 = vpop.xlane.xlu0 %406
    %v408 = vsel %vm206, %v342, 0.0
    %409 = vadd.xlane.f32.xlu0 %v408
    %v410 = vpop.xlane.xlu0 %409
    %v411 = vsel %vm206, %v344, 0.0
    %412 = vadd.xlane.f32.xlu0 %v411
    %v413 = vpop.xlane.xlu0 %412
    %v414 = vsel %vm206, %v346, 0.0
    %415 = vadd.xlane.f32.xlu0 %v414
    %v416 = vpop.xlane.xlu0 %415
    %v417 = vsel %vm206, %v348, 0.0
    %418 = vadd.xlane.f32.xlu0 %v417
    %v419 = vpop.xlane.xlu0 %418
    %v420 = vsel %vm206, %v350, 0.0
    %421 = vadd.xlane.f32.xlu0 %v420
    %v422 = vpop.xlane.xlu0 %421
    %v423 = vsel %vm206, %v352, 0.0
    %424 = vadd.xlane.f32.xlu0 %v423
    %v425 = vpop.xlane.xlu0 %424
    %v426 = vsel %vm206, %v354, 0.0
    %427 = vadd.xlane.f32.xlu0 %v426
    %v428 = vpop.xlane.xlu0 %427
    %v429 = vsel %vm206, %v356, 0.0
    %430 = vadd.xlane.f32.xlu0 %v429
    %v431 = vpop.xlane.xlu0 %430
    %v432 = vsel %vm206, %v358, 0.0
    %433 = vadd.xlane.f32.xlu0 %v432
    %v434 = vpop.xlane.xlu0 %433
    %v435 = vsel %vm206, %v360, 0.0
    %436 = vadd.xlane.f32.xlu0 %v435
    %v437 = vpop.xlane.xlu0 %436
    %v438 = vsel %vm206, %v362, 0.0
    %439 = vadd.xlane.f32.xlu0 %v438
    %v440 = vpop.xlane.xlu0 %439
    %v441 = vsel %vm206, %v364, 0.0
    %442 = vadd.xlane.f32.xlu0 %v441
    %v443 = vpop.xlane.xlu0 %442
    %v444 = vsel %vm206, %v366, 0.0
    %445 = vadd.xlane.f32.xlu0 %v444
    %v446 = vpop.xlane.xlu0 %445
    %v447 = vsel %vm206, %v368, 0.0
    %448 = vadd.xlane.f32.xlu0 %v447
    %v449 = vpop.xlane.xlu0 %448
    %v450 = vsel %vm206, %v370, 0.0
    %451 = vadd.xlane.f32.xlu0 %v450
    %v452 = vpop.xlane.xlu0 %451
    %v453 = vsel %vm206, %v372, 0.0
    %454 = vadd.xlane.f32.xlu0 %v453
    %v455 = vpop.xlane.xlu0 %454
    %v456 = vsel %vm206, %v374, 0.0
    %457 = vadd.xlane.f32.xlu0 %v456
    %v458 = vpop.xlane.xlu0 %457
    %v459 = vsel %vm206, %v376, 0.0
    %460 = vadd.xlane.f32.xlu0 %v459
    %v461 = vpop.xlane.xlu0 %460
    %v462 = vsel %vm206, %v378, 0.0
    %463 = vadd.xlane.f32.xlu0 %v462
    %v464 = vpop.xlane.xlu0 %463
    %v465 = vsel %vm206, %v380, 0.0
    %466 = vadd.xlane.f32.xlu0 %v465
    %v467 = vpop.xlane.xlu0 %466
    %v468 = vsel %vm206, %v382, 0.0
    %469 = vadd.xlane.f32.xlu0 %v468
    %v470 = vpop.xlane.xlu0 %469
    %v471 = vsel %vm206, %v384, 0.0
    %472 = vadd.xlane.f32.xlu0 %v471
    %v473 = vpop.xlane.xlu0 %472
    %v474 = vsel %vm206, %v386, 0.0
    %475 = vadd.xlane.f32.xlu0 %v474
    %v476 = vpop.xlane.xlu0 %475
    %v477 = vsel %vm206, %v388, 0.0
    %478 = vadd.xlane.f32.xlu0 %v477
    %v479 = vpop.xlane.xlu0 %478
    %v480 = vsel %vm206, %v390, 0.0
    %481 = vadd.xlane.f32.xlu0 %v480
    %v482 = vpop.xlane.xlu0 %481
    %v483 = vsel %vm206, %v392, 0.0
    %484 = vadd.xlane.f32.xlu0 %v483
    %v485 = vpop.xlane.xlu0 %484
    %v486 = vsel %vm206, %v394, 0.0
    %487 = vadd.xlane.f32.xlu0 %v486
    %v488 = vpop.xlane.xlu0 %487
    %v489 = vsel %vm206, %v396, 0.0
    %490 = vadd.xlane.f32.xlu0 %v489
    %v491 = vpop.xlane.xlu0 %490
    %v492 = vsel %vm206, %v398, 0.0
    %493 = vadd.xlane.f32.xlu0 %v492
    %v494 = vpop.xlane.xlu0 %493
    %v495 = vlog2.pop %v401
    %v496 = vmul.f32 %v495, 0.6931472
    %v497 = vlog2.pop %v404
    %v498 = vmul.f32 %v497, 0.6931472
    %v499 = vlog2.pop %v407
    %v500 = vmul.f32 %v499, 0.6931472
    %v501 = vlog2.pop %v410
    %v502 = vmul.f32 %v501, 0.6931472
    %v503 = vlog2.pop %v413
    %v504 = vmul.f32 %v503, 0.6931472
    %v505 = vlog2.pop %v416
    %v506 = vmul.f32 %v505, 0.6931472
    %v507 = vlog2.pop %v419
    %v508 = vmul.f32 %v507, 0.6931472
    %v509 = vlog2.pop %v422
    %v510 = vmul.f32 %v509, 0.6931472
    %v511 = vlog2.pop %v425
    %v512 = vmul.f32 %v511, 0.6931472
    %v513 = vlog2.pop %v428
    %v514 = vmul.f32 %v513, 0.6931472
    %v515 = vlog2.pop %v431
    %v516 = vmul.f32 %v515, 0.6931472
    %v517 = vlog2.pop %v434
    %v518 = vmul.f32 %v517, 0.6931472
    %v519 = vlog2.pop %v437
    %v520 = vmul.f32 %v519, 0.6931472
    %v521 = vlog2.pop %v440
    %v522 = vmul.f32 %v521, 0.6931472
    %v523 = vlog2.pop %v443
    %v524 = vmul.f32 %v523, 0.6931472
    %v525 = vlog2.pop %v446
    %v526 = vmul.f32 %v525, 0.6931472
    %v527 = vlog2.pop %v449
    %v528 = vmul.f32 %v527, 0.6931472
    %v529 = vlog2.pop %v452
    %v530 = vmul.f32 %v529, 0.6931472
    %v531 = vlog2.pop %v455
    %v532 = vmul.f32 %v531, 0.6931472
    %v533 = vlog2.pop %v458
    %v534 = vmul.f32 %v533, 0.6931472
    %v535 = vlog2.pop %v461
    %v536 = vmul.f32 %v535, 0.6931472
    %v537 = vlog2.pop %v464
    %v538 = vmul.f32 %v537, 0.6931472
    %v539 = vlog2.pop %v467
    %v540 = vmul.f32 %v539, 0.6931472
    %v541 = vlog2.pop %v470
    %v542 = vmul.f32 %v541, 0.6931472
    %v543 = vlog2.pop %v473
    %v544 = vmul.f32 %v543, 0.6931472
    %v545 = vlog2.pop %v476
    %v546 = vmul.f32 %v545, 0.6931472
    %v547 = vlog2.pop %v479
    %v548 = vmul.f32 %v547, 0.6931472
    %v549 = vlog2.pop %v482
    %v550 = vmul.f32 %v549, 0.6931472
    %v551 = vlog2.pop %v485
    %v552 = vmul.f32 %v551, 0.6931472
    %v553 = vlog2.pop %v488
    %v554 = vmul.f32 %v553, 0.6931472
    %v555 = vlog2.pop %v491
    %v556 = vmul.f32 %v555, 0.6931472
    %v557 = vlog2.pop %v494
    %v558 = vmul.f32 %v557, 0.6931472
    %v559 = vsel %vm174, %v303, 0.0
    %v560 = vsel %vm175, %v304, 0.0
    %v561 = vsel %vm176, %v305, 0.0
    %v562 = vsel %vm177, %v306, 0.0
    %v563 = vsel %vm178, %v307, 0.0
    %v564 = vsel %vm179, %v308, 0.0
    %v565 = vsel %vm180, %v309, 0.0
    %v566 = vsel %vm181, %v310, 0.0
    %v567 = vsel %vm182, %v311, 0.0
    %v568 = vsel %vm183, %v312, 0.0
    %v569 = vsel %vm184, %v313, 0.0
    %v570 = vsel %vm185, %v314, 0.0
    %v571 = vsel %vm186, %v315, 0.0
    %v572 = vsel %vm187, %v316, 0.0
    %v573 = vsel %vm188, %v317, 0.0
    %v574 = vsel %vm189, %v318, 0.0
    %v575 = vsel %vm190, %v319, 0.0
    %v576 = vsel %vm191, %v320, 0.0
    %v577 = vsel %vm192, %v321, 0.0
    %v578 = vsel %vm193, %v322, 0.0
    %v579 = vsel %vm194, %v323, 0.0
    %v580 = vsel %vm195, %v324, 0.0
    %v581 = vsel %vm196, %v325, 0.0
    %v582 = vsel %vm197, %v326, 0.0
    %v583 = vsel %vm198, %v327, 0.0
    %v584 = vsel %vm199, %v328, 0.0
    %v585 = vsel %vm200, %v329, 0.0
    %v586 = vsel %vm201, %v330, 0.0
    %v587 = vsel %vm202, %v331, 0.0
    %v588 = vsel %vm203, %v332, 0.0
    %v589 = vsel %vm204, %v333, 0.0
    %v590 = vsel %vm205, %v334, 0.0
    %v591 = vsel %vm206, %v559, 0.0
    %592 = vadd.xlane.f32.xlu0 %v591
    %v593 = vpop.xlane.xlu0 %592
    %v594 = vsel %vm206, %v560, 0.0
    %595 = vadd.xlane.f32.xlu0 %v594
    %v596 = vpop.xlane.xlu0 %595
    %v597 = vsel %vm206, %v561, 0.0
    %598 = vadd.xlane.f32.xlu0 %v597
    %v599 = vpop.xlane.xlu0 %598
    %v600 = vsel %vm206, %v562, 0.0
    %601 = vadd.xlane.f32.xlu0 %v600
    %v602 = vpop.xlane.xlu0 %601
    %v603 = vsel %vm206, %v563, 0.0
    %604 = vadd.xlane.f32.xlu0 %v603
    %v605 = vpop.xlane.xlu0 %604
    %v606 = vsel %vm206, %v564, 0.0
    %607 = vadd.xlane.f32.xlu0 %v606
    %v608 = vpop.xlane.xlu0 %607
    %v609 = vsel %vm206, %v565, 0.0
    %610 = vadd.xlane.f32.xlu0 %v609
    %v611 = vpop.xlane.xlu0 %610
    %v612 = vsel %vm206, %v566, 0.0
    %613 = vadd.xlane.f32.xlu0 %v612
    %v614 = vpop.xlane.xlu0 %613
    %v615 = vsel %vm206, %v567, 0.0
    %616 = vadd.xlane.f32.xlu0 %v615
    %v617 = vpop.xlane.xlu0 %616
    %v618 = vsel %vm206, %v568, 0.0
    %619 = vadd.xlane.f32.xlu0 %v618
    %v620 = vpop.xlane.xlu0 %619
    %v621 = vsel %vm206, %v569, 0.0
    %622 = vadd.xlane.f32.xlu0 %v621
    %v623 = vpop.xlane.xlu0 %622
    %v624 = vsel %vm206, %v570, 0.0
    %625 = vadd.xlane.f32.xlu0 %v624
    %v626 = vpop.xlane.xlu0 %625
    %v627 = vsel %vm206, %v571, 0.0
    %628 = vadd.xlane.f32.xlu0 %v627
    %v629 = vpop.xlane.xlu0 %628
    %v630 = vsel %vm206, %v572, 0.0
    %631 = vadd.xlane.f32.xlu0 %v630
    %v632 = vpop.xlane.xlu0 %631
    %v633 = vsel %vm206, %v573, 0.0
    %634 = vadd.xlane.f32.xlu0 %v633
    %v635 = vpop.xlane.xlu0 %634
    %v636 = vsel %vm206, %v574, 0.0
    %637 = vadd.xlane.f32.xlu0 %v636
    %v638 = vpop.xlane.xlu0 %637
    %v639 = vsel %vm206, %v575, 0.0
    %640 = vadd.xlane.f32.xlu0 %v639
    %v641 = vpop.xlane.xlu0 %640
    %v642 = vsel %vm206, %v576, 0.0
    %643 = vadd.xlane.f32.xlu0 %v642
    %v644 = vpop.xlane.xlu0 %643
    %v645 = vsel %vm206, %v577, 0.0
    %646 = vadd.xlane.f32.xlu0 %v645
    %v647 = vpop.xlane.xlu0 %646
    %v648 = vsel %vm206, %v578, 0.0
    %649 = vadd.xlane.f32.xlu0 %v648
    %v650 = vpop.xlane.xlu0 %649
    %v651 = vsel %vm206, %v579, 0.0
    %652 = vadd.xlane.f32.xlu0 %v651
    %v653 = vpop.xlane.xlu0 %652
    %v654 = vsel %vm206, %v580, 0.0
    %655 = vadd.xlane.f32.xlu0 %v654
    %v656 = vpop.xlane.xlu0 %655
    %v657 = vsel %vm206, %v581, 0.0
    %658 = vadd.xlane.f32.xlu0 %v657
    %v659 = vpop.xlane.xlu0 %658
    %v660 = vsel %vm206, %v582, 0.0
    %661 = vadd.xlane.f32.xlu0 %v660
    %v662 = vpop.xlane.xlu0 %661
    %v663 = vsel %vm206, %v583, 0.0
    %664 = vadd.xlane.f32.xlu0 %v663
    %v665 = vpop.xlane.xlu0 %664
    %v666 = vsel %vm206, %v584, 0.0
    %667 = vadd.xlane.f32.xlu0 %v666
    %v668 = vpop.xlane.xlu0 %667
    %v669 = vsel %vm206, %v585, 0.0
    %670 = vadd.xlane.f32.xlu0 %v669
    %v671 = vpop.xlane.xlu0 %670
    %v672 = vsel %vm206, %v586, 0.0
    %673 = vadd.xlane.f32.xlu0 %v672
    %v674 = vpop.xlane.xlu0 %673
    %v675 = vsel %vm206, %v587, 0.0
    %676 = vadd.xlane.f32.xlu0 %v675
    %v677 = vpop.xlane.xlu0 %676
    %v678 = vsel %vm206, %v588, 0.0
    %679 = vadd.xlane.f32.xlu0 %v678
    %v680 = vpop.xlane.xlu0 %679
    %v681 = vsel %vm206, %v589, 0.0
    %682 = vadd.xlane.f32.xlu0 %v681
    %v683 = vpop.xlane.xlu0 %682
    %v684 = vsel %vm206, %v590, 0.0
    %685 = vadd.xlane.f32.xlu0 %v684
    %v686 = vpop.xlane.xlu0 %685
    %v687 = vsub.f32 %v496, %v593
    %v688 = vsub.f32 %v498, %v596
    %v689 = vsub.f32 %v500, %v599
    %v690 = vsub.f32 %v502, %v602
    %v691 = vsub.f32 %v504, %v605
    %v692 = vsub.f32 %v506, %v608
    %v693 = vsub.f32 %v508, %v611
    %v694 = vsub.f32 %v510, %v614
    %v695 = vsub.f32 %v512, %v617
    %v696 = vsub.f32 %v514, %v620
    %v697 = vsub.f32 %v516, %v623
    %v698 = vsub.f32 %v518, %v626
    %v699 = vsub.f32 %v520, %v629
    %v700 = vsub.f32 %v522, %v632
    %v701 = vsub.f32 %v524, %v635
    %v702 = vsub.f32 %v526, %v638
    %v703 = vsub.f32 %v528, %v641
    %v704 = vsub.f32 %v530, %v644
    %v705 = vsub.f32 %v532, %v647
    %v706 = vsub.f32 %v534, %v650
    %v707 = vsub.f32 %v536, %v653
    %v708 = vsub.f32 %v538, %v656
    %v709 = vsub.f32 %v540, %v659
    %v710 = vsub.f32 %v542, %v662
    %v711 = vsub.f32 %v544, %v665
    %v712 = vsub.f32 %v546, %v668
    %v713 = vsub.f32 %v548, %v671
    %v714 = vsub.f32 %v550, %v674
    %v715 = vsub.f32 %v552, %v677
    %v716 = vsub.f32 %v554, %v680
    %v717 = vsub.f32 %v556, %v683
    %v718 = vsub.f32 %v558, %v686
    %v719 = vsub.f32 0.0, %v687
    %v720 = vsub.f32 0.0, %v688
    %v721 = vsub.f32 0.0, %v689
    %v722 = vsub.f32 0.0, %v690
    %v723 = vsub.f32 0.0, %v691
    %v724 = vsub.f32 0.0, %v692
    %v725 = vsub.f32 0.0, %v693
    %v726 = vsub.f32 0.0, %v694
    %v727 = vsub.f32 0.0, %v695
    %v728 = vsub.f32 0.0, %v696
    %v729 = vsub.f32 0.0, %v697
    %v730 = vsub.f32 0.0, %v698
    %v731 = vsub.f32 0.0, %v699
    %v732 = vsub.f32 0.0, %v700
    %v733 = vsub.f32 0.0, %v701
    %v734 = vsub.f32 0.0, %v702
    %v735 = vsub.f32 0.0, %v703
    %v736 = vsub.f32 0.0, %v704
    %v737 = vsub.f32 0.0, %v705
    %v738 = vsub.f32 0.0, %v706
    %v739 = vsub.f32 0.0, %v707
    %v740 = vsub.f32 0.0, %v708
    %v741 = vsub.f32 0.0, %v709
    %v742 = vsub.f32 0.0, %v710
    %v743 = vsub.f32 0.0, %v711
    %v744 = vsub.f32 0.0, %v712
    %v745 = vsub.f32 0.0, %v713
    %v746 = vsub.f32 0.0, %v714
    %v747 = vsub.f32 0.0, %v715
    %v748 = vsub.f32 0.0, %v716
    %v749 = vsub.f32 0.0, %v717
    %v750 = vsub.f32 0.0, %v718
    %v751 = vmul.f32 %v719, 1.442695
    %v752 = vpow.pop %v751
    %v753 = vmul.f32 %v720, 1.442695
    %v754 = vpow.pop %v753
    %v755 = vmul.f32 %v721, 1.442695
    %v756 = vpow.pop %v755
    %v757 = vmul.f32 %v722, 1.442695
    %v758 = vpow.pop %v757
    %v759 = vmul.f32 %v723, 1.442695
    %v760 = vpow.pop %v759
    %v761 = vmul.f32 %v724, 1.442695
    %v762 = vpow.pop %v761
    %v763 = vmul.f32 %v725, 1.442695
    %v764 = vpow.pop %v763
    %v765 = vmul.f32 %v726, 1.442695
    %v766 = vpow.pop %v765
    %v767 = vmul.f32 %v727, 1.442695
    %v768 = vpow.pop %v767
    %v769 = vmul.f32 %v728, 1.442695
    %v770 = vpow.pop %v769
    %v771 = vmul.f32 %v729, 1.442695
    %v772 = vpow.pop %v771
    %v773 = vmul.f32 %v730, 1.442695
    %v774 = vpow.pop %v773
    %v775 = vmul.f32 %v731, 1.442695
    %v776 = vpow.pop %v775
    %v777 = vmul.f32 %v732, 1.442695
    %v778 = vpow.pop %v777
    %v779 = vmul.f32 %v733, 1.442695
    %v780 = vpow.pop %v779
    %v781 = vmul.f32 %v734, 1.442695
    %v782 = vpow.pop %v781
    %v783 = vmul.f32 %v735, 1.442695
    %v784 = vpow.pop %v783
    %v785 = vmul.f32 %v736, 1.442695
    %v786 = vpow.pop %v785
    %v787 = vmul.f32 %v737, 1.442695
    %v788 = vpow.pop %v787
    %v789 = vmul.f32 %v738, 1.442695
    %v790 = vpow.pop %v789
    %v791 = vmul.f32 %v739, 1.442695
    %v792 = vpow.pop %v791
    %v793 = vmul.f32 %v740, 1.442695
    %v794 = vpow.pop %v793
    %v795 = vmul.f32 %v741, 1.442695
    %v796 = vpow.pop %v795
    %v797 = vmul.f32 %v742, 1.442695
    %v798 = vpow.pop %v797
    %v799 = vmul.f32 %v743, 1.442695
    %v800 = vpow.pop %v799
    %v801 = vmul.f32 %v744, 1.442695
    %v802 = vpow.pop %v801
    %v803 = vmul.f32 %v745, 1.442695
    %v804 = vpow.pop %v803
    %v805 = vmul.f32 %v746, 1.442695
    %v806 = vpow.pop %v805
    %v807 = vmul.f32 %v747, 1.442695
    %v808 = vpow.pop %v807
    %v809 = vmul.f32 %v748, 1.442695
    %v810 = vpow.pop %v809
    %v811 = vmul.f32 %v749, 1.442695
    %v812 = vpow.pop %v811
    %v813 = vmul.f32 %v750, 1.442695
    %v814 = vpow.pop %v813
    %v815 = vmax.f32 %v752, 1e-06
    %v816 = vmax.f32 %v754, 1e-06
    %v817 = vmax.f32 %v756, 1e-06
    %v818 = vmax.f32 %v758, 1e-06
    %v819 = vmax.f32 %v760, 1e-06
    %v820 = vmax.f32 %v762, 1e-06
    %v821 = vmax.f32 %v764, 1e-06
    %v822 = vmax.f32 %v766, 1e-06
    %v823 = vmax.f32 %v768, 1e-06
    %v824 = vmax.f32 %v770, 1e-06
    %v825 = vmax.f32 %v772, 1e-06
    %v826 = vmax.f32 %v774, 1e-06
    %v827 = vmax.f32 %v776, 1e-06
    %v828 = vmax.f32 %v778, 1e-06
    %v829 = vmax.f32 %v780, 1e-06
    %v830 = vmax.f32 %v782, 1e-06
    %v831 = vmax.f32 %v784, 1e-06
    %v832 = vmax.f32 %v786, 1e-06
    %v833 = vmax.f32 %v788, 1e-06
    %v834 = vmax.f32 %v790, 1e-06
    %v835 = vmax.f32 %v792, 1e-06
    %v836 = vmax.f32 %v794, 1e-06
    %v837 = vmax.f32 %v796, 1e-06
    %v838 = vmax.f32 %v798, 1e-06
    %v839 = vmax.f32 %v800, 1e-06
    %v840 = vmax.f32 %v802, 1e-06
    %v841 = vmax.f32 %v804, 1e-06
    %v842 = vmax.f32 %v806, 1e-06
    %v843 = vmax.f32 %v808, 1e-06
    %v844 = vmax.f32 %v810, 1e-06
    %v845 = vmax.f32 %v812, 1e-06
    %v846 = vmax.f32 %v814, 1e-06
    %v847 = vsub.f32 1.0, %v815
    %v848 = vsub.f32 1.0, %v816
    %v849 = vsub.f32 1.0, %v817
    %v850 = vsub.f32 1.0, %v818
    %v851 = vsub.f32 1.0, %v819
    %v852 = vsub.f32 1.0, %v820
    %v853 = vsub.f32 1.0, %v821
    %v854 = vsub.f32 1.0, %v822
    %v855 = vsub.f32 1.0, %v823
    %v856 = vsub.f32 1.0, %v824
    %v857 = vsub.f32 1.0, %v825
    %v858 = vsub.f32 1.0, %v826
    %v859 = vsub.f32 1.0, %v827
    %v860 = vsub.f32 1.0, %v828
    %v861 = vsub.f32 1.0, %v829
    %v862 = vsub.f32 1.0, %v830
    %v863 = vsub.f32 1.0, %v831
    %v864 = vsub.f32 1.0, %v832
    %v865 = vsub.f32 1.0, %v833
    %v866 = vsub.f32 1.0, %v834
    %v867 = vsub.f32 1.0, %v835
    %v868 = vsub.f32 1.0, %v836
    %v869 = vsub.f32 1.0, %v837
    %v870 = vsub.f32 1.0, %v838
    %v871 = vsub.f32 1.0, %v839
    %v872 = vsub.f32 1.0, %v840
    %v873 = vsub.f32 1.0, %v841
    %v874 = vsub.f32 1.0, %v842
    %v875 = vsub.f32 1.0, %v843
    %v876 = vsub.f32 1.0, %v844
    %v877 = vsub.f32 1.0, %v845
    %v878 = vsub.f32 1.0, %v846
    %v879 = vmax.f32 %v847, 0.0
    %v880 = vmax.f32 %v848, 0.0
    %v881 = vmax.f32 %v849, 0.0
    %v882 = vmax.f32 %v850, 0.0
    %v883 = vmax.f32 %v851, 0.0
    %v884 = vmax.f32 %v852, 0.0
    %v885 = vmax.f32 %v853, 0.0
    %v886 = vmax.f32 %v854, 0.0
    %v887 = vmax.f32 %v855, 0.0
    %v888 = vmax.f32 %v856, 0.0
    %v889 = vmax.f32 %v857, 0.0
    %v890 = vmax.f32 %v858, 0.0
    %v891 = vmax.f32 %v859, 0.0
    %v892 = vmax.f32 %v860, 0.0
    %v893 = vmax.f32 %v861, 0.0
    %v894 = vmax.f32 %v862, 0.0
    %v895 = vmax.f32 %v863, 0.0
    %v896 = vmax.f32 %v864, 0.0
    %v897 = vmax.f32 %v865, 0.0
    %v898 = vmax.f32 %v866, 0.0
    %v899 = vmax.f32 %v867, 0.0
    %v900 = vmax.f32 %v868, 0.0
    %v901 = vmax.f32 %v869, 0.0
    %v902 = vmax.f32 %v870, 0.0
    %v903 = vmax.f32 %v871, 0.0
    %v904 = vmax.f32 %v872, 0.0
    %v905 = vmax.f32 %v873, 0.0
    %v906 = vmax.f32 %v874, 0.0
    %v907 = vmax.f32 %v875, 0.0
    %v908 = vmax.f32 %v876, 0.0
    %v909 = vmax.f32 %v877, 0.0
    %v910 = vmax.f32 %v878, 0.0
    %v911 = vmul.f32 %v879, %v879
    %v912 = vmul.f32 %v880, %v880
    %v913 = vmul.f32 %v881, %v881
    %v914 = vmul.f32 %v882, %v882
    %v915 = vmul.f32 %v883, %v883
    %v916 = vmul.f32 %v884, %v884
    %v917 = vmul.f32 %v885, %v885
    %v918 = vmul.f32 %v886, %v886
    %v919 = vmul.f32 %v887, %v887
    %v920 = vmul.f32 %v888, %v888
    %v921 = vmul.f32 %v889, %v889
    %v922 = vmul.f32 %v890, %v890
    %v923 = vmul.f32 %v891, %v891
    %v924 = vmul.f32 %v892, %v892
    %v925 = vmul.f32 %v893, %v893
    %v926 = vmul.f32 %v894, %v894
    %v927 = vmul.f32 %v895, %v895
    %v928 = vmul.f32 %v896, %v896
    %v929 = vmul.f32 %v897, %v897
    %v930 = vmul.f32 %v898, %v898
    %v931 = vmul.f32 %v899, %v899
    %v932 = vmul.f32 %v900, %v900
    %v933 = vmul.f32 %v901, %v901
    %v934 = vmul.f32 %v902, %v902
    %v935 = vmul.f32 %v903, %v903
    %v936 = vmul.f32 %v904, %v904
    %v937 = vmul.f32 %v905, %v905
    %v938 = vmul.f32 %v906, %v906
    %v939 = vmul.f32 %v907, %v907
    %v940 = vmul.f32 %v908, %v908
    %v941 = vmul.f32 %v909, %v909
    %v942 = vmul.f32 %v910, %v910
    %v943 = vmul.f32 %v911, %v687
    %v944 = vmul.f32 %v912, %v688
    %v945 = vmul.f32 %v913, %v689
    %v946 = vmul.f32 %v914, %v690
    %v947 = vmul.f32 %v915, %v691
    %v948 = vmul.f32 %v916, %v692
    %v949 = vmul.f32 %v917, %v693
    %v950 = vmul.f32 %v918, %v694
    %v951 = vmul.f32 %v919, %v695
    %v952 = vmul.f32 %v920, %v696
    %v953 = vmul.f32 %v921, %v697
    %v954 = vmul.f32 %v922, %v698
    %v955 = vmul.f32 %v923, %v699
    %v956 = vmul.f32 %v924, %v700
    %v957 = vmul.f32 %v925, %v701
    %v958 = vmul.f32 %v926, %v702
    %v959 = vmul.f32 %v927, %v703
    %v960 = vmul.f32 %v928, %v704
    %v961 = vmul.f32 %v929, %v705
    %v962 = vmul.f32 %v930, %v706
    %v963 = vmul.f32 %v931, %v707
    %v964 = vmul.f32 %v932, %v708
    %v965 = vmul.f32 %v933, %v709
    %v966 = vmul.f32 %v934, %v710
    %v967 = vmul.f32 %v935, %v711
    %v968 = vmul.f32 %v936, %v712
    %v969 = vmul.f32 %v937, %v713
    %v970 = vmul.f32 %v938, %v714
    %v971 = vmul.f32 %v939, %v715
    %v972 = vmul.f32 %v940, %v716
    %v973 = vmul.f32 %v941, %v717
    %v974 = vmul.f32 %v942, %v718
    %v1007 = vlaneseq
    %v1008 = vshrl.u32 %v1007, 7
    %v1009 = vsub.s32 %v77, %v1008
    %v1010 = vrot.slane %v943, %v1009
    %v1011 = vadd.s32 %v77, 4294967288
    %v1012 = vlaneseq
    %v1013 = vshrl.u32 %v1012, 7
    %v1014 = vsub.s32 %v1011, %v1013
    %v1015 = vrot.slane %v944, %v1014
    %vm1016 = vcmask 130112
    %v1017 = vsel %vm1016, %v1015, %v1010
    %v1018 = vadd.s32 %v77, 4294967280
    %v1019 = vlaneseq
    %v1020 = vshrl.u32 %v1019, 7
    %v1021 = vsub.s32 %v1018, %v1020
    %v1022 = vrot.slane %v945, %v1021
    %vm1023 = vcmask 195712
    %v1024 = vsel %vm1023, %v1022, %v1017
    %v1025 = vadd.s32 %v77, 4294967272
    %v1026 = vlaneseq
    %v1027 = vshrl.u32 %v1026, 7
    %v1028 = vsub.s32 %v1025, %v1027
    %v1029 = vrot.slane %v946, %v1028
    %vm1030 = vcmask 261312
    %v1031 = vsel %vm1030, %v1029, %v1024
    %v1032 = vadd.s32 %v77, 4294967264
    %v1033 = vlaneseq
    %v1034 = vshrl.u32 %v1033, 7
    %v1035 = vsub.s32 %v1032, %v1034
    %v1036 = vrot.slane %v947, %v1035
    %vm1037 = vcmask 326912
    %v1038 = vsel %vm1037, %v1036, %v1031
    %v1039 = vadd.s32 %v77, 4294967256
    %v1040 = vlaneseq
    %v1041 = vshrl.u32 %v1040, 7
    %v1042 = vsub.s32 %v1039, %v1041
    %v1043 = vrot.slane %v948, %v1042
    %vm1044 = vcmask 392512
    %v1045 = vsel %vm1044, %v1043, %v1038
    %v1046 = vadd.s32 %v77, 4294967248
    %v1047 = vlaneseq
    %v1048 = vshrl.u32 %v1047, 7
    %v1049 = vsub.s32 %v1046, %v1048
    %v1050 = vrot.slane %v949, %v1049
    %vm1051 = vcmask 458112
    %v1052 = vsel %vm1051, %v1050, %v1045
    %v1053 = vadd.s32 %v77, 4294967240
    %v1054 = vlaneseq
    %v1055 = vshrl.u32 %v1054, 7
    %v1056 = vsub.s32 %v1053, %v1055
    %v1057 = vrot.slane %v950, %v1056
    %vm1058 = vcmask 523712
    %v1059 = vsel %vm1058, %v1057, %v1052
    %v1060 = vadd.s32 %v77, 4294967232
    %v1061 = vlaneseq
    %v1062 = vshrl.u32 %v1061, 7
    %v1063 = vsub.s32 %v1060, %v1062
    %v1064 = vrot.slane %v951, %v1063
    %vm1065 = vcmask 589312
    %v1066 = vsel %vm1065, %v1064, %v1059
    %v1067 = vadd.s32 %v77, 4294967224
    %v1068 = vlaneseq
    %v1069 = vshrl.u32 %v1068, 7
    %v1070 = vsub.s32 %v1067, %v1069
    %v1071 = vrot.slane %v952, %v1070
    %vm1072 = vcmask 654912
    %v1073 = vsel %vm1072, %v1071, %v1066
    %v1074 = vadd.s32 %v77, 4294967216
    %v1075 = vlaneseq
    %v1076 = vshrl.u32 %v1075, 7
    %v1077 = vsub.s32 %v1074, %v1076
    %v1078 = vrot.slane %v953, %v1077
    %vm1079 = vcmask 720512
    %v1080 = vsel %vm1079, %v1078, %v1073
    %v1081 = vadd.s32 %v77, 4294967208
    %v1082 = vlaneseq
    %v1083 = vshrl.u32 %v1082, 7
    %v1084 = vsub.s32 %v1081, %v1083
    %v1085 = vrot.slane %v954, %v1084
    %vm1086 = vcmask 786112
    %v1087 = vsel %vm1086, %v1085, %v1080
    %v1088 = vadd.s32 %v77, 4294967200
    %v1089 = vlaneseq
    %v1090 = vshrl.u32 %v1089, 7
    %v1091 = vsub.s32 %v1088, %v1090
    %v1092 = vrot.slane %v955, %v1091
    %vm1093 = vcmask 851712
    %v1094 = vsel %vm1093, %v1092, %v1087
    %v1095 = vadd.s32 %v77, 4294967192
    %v1096 = vlaneseq
    %v1097 = vshrl.u32 %v1096, 7
    %v1098 = vsub.s32 %v1095, %v1097
    %v1099 = vrot.slane %v956, %v1098
    %vm1100 = vcmask 917312
    %v1101 = vsel %vm1100, %v1099, %v1094
    %v1102 = vadd.s32 %v77, 4294967184
    %v1103 = vlaneseq
    %v1104 = vshrl.u32 %v1103, 7
    %v1105 = vsub.s32 %v1102, %v1104
    %v1106 = vrot.slane %v957, %v1105
    %vm1107 = vcmask 982912
    %v1108 = vsel %vm1107, %v1106, %v1101
    %v1109 = vadd.s32 %v77, 4294967176
    %v1110 = vlaneseq
    %v1111 = vshrl.u32 %v1110, 7
    %v1112 = vsub.s32 %v1109, %v1111
    %v1113 = vrot.slane %v958, %v1112
    %vm1114 = vcmask 1048512
    %v1115 = vsel %vm1114, %v1113, %v1108
    %v1116 = vlaneseq
    %v1117 = vshrl.u32 %v1116, 7
    %v1118 = vsub.s32 %v77, %v1117
    %v1119 = vrot.slane %v959, %v1118
    %v1120 = vlaneseq
    %v1121 = vshrl.u32 %v1120, 7
    %v1122 = vsub.s32 %v1011, %v1121
    %v1123 = vrot.slane %v960, %v1122
    %v1124 = vsel %vm1016, %v1123, %v1119
    %v1125 = vlaneseq
    %v1126 = vshrl.u32 %v1125, 7
    %v1127 = vsub.s32 %v1018, %v1126
    %v1128 = vrot.slane %v961, %v1127
    %v1129 = vsel %vm1023, %v1128, %v1124
    %v1130 = vlaneseq
    %v1131 = vshrl.u32 %v1130, 7
    %v1132 = vsub.s32 %v1025, %v1131
    %v1133 = vrot.slane %v962, %v1132
    %v1134 = vsel %vm1030, %v1133, %v1129
    %v1135 = vlaneseq
    %v1136 = vshrl.u32 %v1135, 7
    %v1137 = vsub.s32 %v1032, %v1136
    %v1138 = vrot.slane %v963, %v1137
    %v1139 = vsel %vm1037, %v1138, %v1134
    %v1140 = vlaneseq
    %v1141 = vshrl.u32 %v1140, 7
    %v1142 = vsub.s32 %v1039, %v1141
    %v1143 = vrot.slane %v964, %v1142
    %v1144 = vsel %vm1044, %v1143, %v1139
    %v1145 = vlaneseq
    %v1146 = vshrl.u32 %v1145, 7
    %v1147 = vsub.s32 %v1046, %v1146
    %v1148 = vrot.slane %v965, %v1147
    %v1149 = vsel %vm1051, %v1148, %v1144
    %v1150 = vlaneseq
    %v1151 = vshrl.u32 %v1150, 7
    %v1152 = vsub.s32 %v1053, %v1151
    %v1153 = vrot.slane %v966, %v1152
    %v1154 = vsel %vm1058, %v1153, %v1149
    %v1155 = vlaneseq
    %v1156 = vshrl.u32 %v1155, 7
    %v1157 = vsub.s32 %v1060, %v1156
    %v1158 = vrot.slane %v967, %v1157
    %v1159 = vsel %vm1065, %v1158, %v1154
    %v1160 = vlaneseq
    %v1161 = vshrl.u32 %v1160, 7
    %v1162 = vsub.s32 %v1067, %v1161
    %v1163 = vrot.slane %v968, %v1162
    %v1164 = vsel %vm1072, %v1163, %v1159
    %v1165 = vlaneseq
    %v1166 = vshrl.u32 %v1165, 7
    %v1167 = vsub.s32 %v1074, %v1166
    %v1168 = vrot.slane %v969, %v1167
    %v1169 = vsel %vm1079, %v1168, %v1164
    %v1170 = vlaneseq
    %v1171 = vshrl.u32 %v1170, 7
    %v1172 = vsub.s32 %v1081, %v1171
    %v1173 = vrot.slane %v970, %v1172
    %v1174 = vsel %vm1086, %v1173, %v1169
    %v1175 = vlaneseq
    %v1176 = vshrl.u32 %v1175, 7
    %v1177 = vsub.s32 %v1088, %v1176
    %v1178 = vrot.slane %v971, %v1177
    %v1179 = vsel %vm1093, %v1178, %v1174
    %v1180 = vlaneseq
    %v1181 = vshrl.u32 %v1180, 7
    %v1182 = vsub.s32 %v1095, %v1181
    %v1183 = vrot.slane %v972, %v1182
    %v1184 = vsel %vm1100, %v1183, %v1179
    %v1185 = vlaneseq
    %v1186 = vshrl.u32 %v1185, 7
    %v1187 = vsub.s32 %v1102, %v1186
    %v1188 = vrot.slane %v973, %v1187
    %v1189 = vsel %vm1107, %v1188, %v1184
    %v1190 = vlaneseq
    %v1191 = vshrl.u32 %v1190, 7
    %v1192 = vsub.s32 %v1109, %v1191
    %v1193 = vrot.slane %v974, %v1192
    %v1194 = vsel %vm1114, %v1193, %v1189
    %vm1195 = vcmask 1041409
    %v1196 = vsel %vm1195, %v1194, %v1115
    %1198 = vst [vmem:[#allocation2] sm:$0x3] %v1196
    // Predicated region
    $region10: #{tpu_custom_call.1} parent=1 // pred_check
      _
    $region11: #{tpu_custom_call.1} parent=1 // pred_check_branch
      %1200 = sbr.rel (0) target = $region13
    $region12: #{tpu_custom_call.1} parent=1 // pred_region
      %s1202 = ssub.s32 32, 32
      %1203 = vsyncadd [#allocation3], %s1202
      %s1205 = sshll.u32 [#allocation2], 4
      %s1206 = int_to_ptr.vmem [resolvable:$true] %s1205
      %1208 = dma.vmem_to_hbm [thread:$0]  %s1206, 32, %s2, [#allocation3]
    $region13: #{tpu_custom_call.1} parent=1 // pred_fallthru
      _
    // Predicated region
    $region14: #{tpu_custom_call.1} parent=1 // pred_check
      _
    $region15: #{tpu_custom_call.1} parent=1 // pred_check_branch
      %1210 = sbr.rel (0) target = $region17
    $region16: #{tpu_custom_call.1} parent=1 // pred_region
      %1211 = dma.done [#allocation3], 32
    $region17: #{tpu_custom_call.1} parent=1 // pred_fallthru
      _
    %1212 = vsyncpa [#allocation3], 1

</llo_original>
